<compile_context>
chip_gen: v7x
topology: tpu7x:2x2x1
jax: 0.10.0
libtpu: 0.0.40
codegen_flags: <defaults>
</compile_context>

<pallas_src>
import functools

import jax
import jax.numpy as jnp
import numpy as np
from jax import lax
from jax.experimental import pallas as pl
from jax.experimental.pallas import tpu as pltpu


def _ucr_kernel(x_row_ref, xe_col_ref, inv_row_ref, inv_col_ref, diag_ref,
                *rest, has_pad):
    """One (row-block i, column-block j) step of the online-logsumexp loss."""
    if has_pad:
        bias_ref, o_ref, m_sc, l_sc = rest
    else:
        o_ref, m_sc, l_sc = rest
        bias_ref = None

    j = pl.program_id(1)
    nj = pl.num_programs(1)

    @pl.when(j == 0)
    def _init():
        m_sc[...] = jnp.full_like(m_sc, -jnp.inf)
        l_sc[...] = jnp.zeros_like(l_sc)

    # x_rows @ x_enh_cols^T, NT-form dot_general (contraction on the
    # lane-contiguous last dim) -> MXU, f32 accumulation.  Operands arrive
    # already in the MXU dtype (bf16 when the original input was f32).
    dots = lax.dot_general(
        x_row_ref[...], xe_col_ref[...],
        dimension_numbers=(((1,), (1,)), ((), ())),
        preferred_element_type=jnp.float32)                      # [TM, TN]

    # Factorized cosine/temp scaling: two broadcast multiplies.  All norms,
    # reciprocals and eps clamping were precomputed in the wrapper.
    s = dots * inv_row_ref[...] * inv_col_ref[...]               # [TM, TN]
    if has_pad:
        s = s + bias_ref[...]                                    # -1e30 on padded cols

    # Flash-style online logsumexp across column blocks.
    m_prev = m_sc[...]
    m_new = jnp.maximum(m_prev, jnp.max(s, axis=-1, keepdims=True))
    p = jnp.exp(s - m_new)
    l_sc[...] = jnp.exp(m_prev - m_new) * l_sc[...] + jnp.sum(p, axis=-1, keepdims=True)
    m_sc[...] = m_new

    @pl.when(j == nj - 1)
    def _finalize():
        # per-row loss_i = logsumexp_j(s_ij) - s_ii
        o_ref[...] = (m_sc[...] + jnp.log(l_sc[...]) - diag_ref[...]).astype(o_ref.dtype)


def _round_up(a, b):
    return (a + b - 1) // b * b


def _plan_tiles(n, d, mxu_itemsize, budget=12 << 20):
    """Pick (n_pad, tm, tn): VMEM-budgeted, (8,128)-friendly, >=2 row blocks."""
    def stream_bytes(tm, tn):
        # double-buffered row + column operand streams (the dominant term)
        return 2 * (tm + tn) * d * mxu_itemsize

    if n <= 128:
        n_pad = _round_up(n, 8)
        return n_pad, n_pad, n_pad            # single tile; tn == full dim is legal

    n_pad = _round_up(n, 128)
    # Column tile: large to amortize per-grid-step overhead; must be 128-aligned.
    tn = 128
    for cand in (512, 256):
        if n_pad % cand == 0 and stream_bytes(128, cand) <= budget:
            tn = cand
            break
    # Row tile: keep at least 2 row blocks so the "parallel" axis can feed
    # both v7x TensorCores.
    tm = 128
    if n_pad % 256 == 0 and n_pad // 256 >= 2 and stream_bytes(256, tn) <= budget:
        tm = 256
    return n_pad, tm, tn


def ucr_loss(x, dropout_mask, *, temp, dropout_prob=0.0, use_bf16_matmul=True):
    """UCR loss.  x: [N, D]; dropout_mask: [N, D] 0/1 keep mask.

    dropout_prob is accepted for API parity with the PyTorch module but is not
    needed: the 1/(1-p) keep-scale cancels exactly inside cosine similarity.
    """
    del dropout_prob
    n, d = x.shape
    sqrt_eps = 1e-4   # per-factor norm clamp; differs from the product clamp
                      # only when a row/column has exactly zero norm.

    x32 = x.astype(jnp.float32)
    xe32 = x32 * dropout_mask.astype(jnp.float32)

    # O(N*D) precompute (one fused XLA pass over x / x_enh): inverse norms,
    # diagonal term, MXU-dtype operands.  This removes every non-matmul
    # recomputation from the O(N^2*D) inner loop.
    inv_nx = 1.0 / jnp.maximum(jnp.sqrt(jnp.sum(x32 * x32, axis=-1)), sqrt_eps)    # [N]
    inv_ne = 1.0 / jnp.maximum(jnp.sqrt(jnp.sum(xe32 * xe32, axis=-1)), sqrt_eps)  # [N]
    diag = jnp.sum(x32 * xe32, axis=-1) * inv_nx * inv_ne * (1.0 / temp)           # s_ii
    inv_row = inv_nx * (1.0 / temp)      # per-row factor (includes 1/temp)
    inv_col = inv_ne                     # per-column factor

    mx_dtype = jnp.bfloat16 if (use_bf16_matmul and x.dtype == jnp.float32) else x.dtype
    x_mx = x32.astype(mx_dtype)
    xe_mx = xe32.astype(mx_dtype)

    n_pad, tm, tn = _plan_tiles(n, d, jnp.dtype(mx_dtype).itemsize)
    pad = n_pad - n
    has_pad = pad > 0
    if has_pad:
        x_mx = jnp.pad(x_mx, ((0, pad), (0, 0)))
        xe_mx = jnp.pad(xe_mx, ((0, pad), (0, 0)))
        inv_row = jnp.pad(inv_row, (0, pad))
        inv_col = jnp.pad(inv_col, (0, pad))
        diag = jnp.pad(diag, (0, pad))
        # Padded columns contribute exp(-1e30) == 0 to every row's logsumexp.
        col_bias = jnp.where(jnp.arange(n_pad) < n, 0.0, -1e30).astype(jnp.float32)

    args = [
        x_mx, xe_mx,
        inv_row.reshape(n_pad, 1).astype(jnp.float32),
        inv_col.reshape(1, n_pad).astype(jnp.float32),   # lane-dense
        diag.reshape(n_pad, 1).astype(jnp.float32),
    ]
    in_specs = [
        pl.BlockSpec((tm, d), lambda i, j: (i, 0)),   # x rows          (MXU dtype)
        pl.BlockSpec((tn, d), lambda i, j: (j, 0)),   # x_enh columns   (MXU dtype)
        pl.BlockSpec((tm, 1), lambda i, j: (i, 0)),   # 1/(||x_i||*temp)
        pl.BlockSpec((1, tn), lambda i, j: (0, j)),   # 1/||e_j||
        pl.BlockSpec((tm, 1), lambda i, j: (i, 0)),   # s_ii
    ]
    if has_pad:
        args.append(col_bias.reshape(1, n_pad))
        in_specs.append(pl.BlockSpec((1, tn), lambda i, j: (0, j)))

    # Raise the scoped-VMEM limit only when the footprint actually needs it
    # (tiles are planned to fit the v5e 16 MiB / v7x 32 MiB defaults).
    isz = jnp.dtype(mx_dtype).itemsize
    needed = 2 * (tm + tn) * d * isz + 2 * (4 * tm + 3 * tn) * 4
    cp_kwargs = dict(dimension_semantics=("parallel", "arbitrary"))
    if needed > (12 << 20):
        cp_kwargs["vmem_limit_bytes"] = int(min(needed + (8 << 20), 48 << 20))

    kernel = functools.partial(_ucr_kernel, has_pad=has_pad)
    per_row = pl.pallas_call(
        kernel,
        out_shape=jax.ShapeDtypeStruct((n_pad, 1), jnp.float32),
        grid_spec=pltpu.PrefetchScalarGridSpec(
            num_scalar_prefetch=0,
            grid=(n_pad // tm, n_pad // tn),
            in_specs=in_specs,
            out_specs=pl.BlockSpec((tm, 1), lambda i, j: (i, 0)),
            scratch_shapes=[
                pltpu.VMEM((tm, 1), jnp.float32),   # running max
                pltpu.VMEM((tm, 1), jnp.float32),   # running sum-exp
            ],
        ),
        compiler_params=pltpu.CompilerParams(**cp_kwargs),
    )(*args)

    # Final mean over the real rows: O(N) glue; padded rows are dropped.
    return jnp.mean(per_row[:n, 0])


def ucr_loss_reference(x, dropout_mask, *, temp, dropout_prob):
    """float64 numpy reference mirroring the PyTorch forward (incl. keep-scale)."""
    x = np.asarray(x, dtype=np.float64)
    keep_scale = 1.0 / (1.0 - dropout_prob) if dropout_prob > 0.0 else 1.0
    xe = x * np.asarray(dropout_mask, dtype=np.float64) * keep_scale
    num = x @ xe.T
    den = np.maximum(
        np.linalg.norm(x, axis=-1, keepdims=True)
        * np.linalg.norm(xe, axis=-1, keepdims=True).T,
        1e-8,
    )
    s = (num / den) / temp
    loss = np.exp(np.diag(s)) / np.sum(np.exp(s), axis=1)
    return float(np.mean(-np.log(loss)))


if __name__ == "__main__":
    temp = 0.5
    dropout_prob = 0.1
    key = jax.random.PRNGKey(0)

    # (n, d, use_bf16_matmul, rtol, atol):
    #   (8, 32)     small single-tile shape consistent with the module
    #   (512, 128)  multi-row-block case (two row blocks -> both v7x TCs)
    #   (200, 72)   awkward N -> padding + column-bias masking path
    #   (1024, 128) multi-column-block case exercising the online LSE, f32 MXU
    cases = [
        (8, 32, True, 5e-3, 5e-3),
        (512, 128, True, 5e-3, 5e-3),
        (200, 72, True, 5e-3, 5e-3),
        (1024, 128, False, 1e-3, 1e-4),
    ]
    for n, d, use_bf16, rtol, atol in cases:
        key, kx, km = jax.random.split(key, 3)
        x = jax.random.normal(kx, (n, d), dtype=jnp.float32)
        # Deterministic dropout keep-mask (Bernoulli(keep_prob)), same role as nn.Dropout.
        dropout_mask = jax.random.bernoulli(
            km, 1.0 - dropout_prob, (n, d)
        ).astype(jnp.float32)

        out = ucr_loss(x, dropout_mask, temp=temp, dropout_prob=dropout_prob,
                       use_bf16_matmul=use_bf16)
        out = jax.block_until_ready(out)

        ref = ucr_loss_reference(x, dropout_mask, temp=temp, dropout_prob=dropout_prob)
        assert jnp.allclose(out, ref, rtol=rtol, atol=atol), (n, d, float(out), ref)

    print("KERNEL_OK")
</pallas_src>

<mosaic_0001>
module attributes {stable_mosaic.version = 11 : i64} {
  func.func @_ucr_kernel(%arg0: i32, %arg1: i32, %arg2: memref<8x32xbf16, #tpu.memory_space<vmem>>, %arg3: memref<8x32xbf16, #tpu.memory_space<vmem>>, %arg4: memref<8x1xf32, #tpu.memory_space<vmem>>, %arg5: memref<1x8xf32, #tpu.memory_space<vmem>>, %arg6: memref<8x1xf32, #tpu.memory_space<vmem>>, %arg7: memref<8x1xf32, #tpu.memory_space<vmem>>, %arg8: memref<8x1xf32, #tpu.memory_space<vmem>>, %arg9: memref<8x1xf32, #tpu.memory_space<vmem>>) attributes {dimension_semantics = [#tpu.dimension_semantics<parallel>, #tpu.dimension_semantics<arbitrary>], iteration_bounds = array<i64: 1, 1>, scalar_prefetch = 0 : i64, scratch_operands = 2 : i64, tpu.core_type = #tpu.core_type<tc>, window_params = [{transform_indices = @transform_0, window_bounds = array<i64: 8, 32>}, {transform_indices = @transform_1, window_bounds = array<i64: 8, 32>}, {transform_indices = @transform_2, window_bounds = array<i64: 8, 1>}, {transform_indices = @transform_3, window_bounds = array<i64: 1, 8>}, {transform_indices = @transform_4, window_bounds = array<i64: 8, 1>}, {transform_indices = @transform_5, window_bounds = array<i64: 8, 1>}]} {
    %c0_i32 = arith.constant 0 : i32
    %0 = arith.cmpi eq, %arg1, %c0_i32 : i32
    %1 = arith.extui %0 : i1 to i32
    %c0_i32_0 = arith.constant 0 : i32
    %2 = arith.cmpi ne, %1, %c0_i32_0 : i32
    scf.if %2 {
      %cst_20 = arith.constant 0xFF800000 : f32
      %31 = vector.broadcast %cst_20 : f32 to vector<8x1xf32>
      %c0_21 = arith.constant 0 : index
      %c0_22 = arith.constant 0 : index
      %32 = vector.load %arg8[%c0_21, %c0_22] : memref<8x1xf32, #tpu.memory_space<vmem>>, vector<8x1xf32>
      tpu.vector_store %arg8[%c0_21, %c0_22], %31 {strides = array<i32>} : memref<8x1xf32, #tpu.memory_space<vmem>>, vector<8x1xf32>,
      %cst_23 = arith.constant 0.000000e+00 : f32
      %33 = vector.broadcast %cst_23 : f32 to vector<8x1xf32>
      %c0_24 = arith.constant 0 : index
      %c0_25 = arith.constant 0 : index
      %34 = vector.load %arg9[%c0_24, %c0_25] : memref<8x1xf32, #tpu.memory_space<vmem>>, vector<8x1xf32>
      tpu.vector_store %arg9[%c0_24, %c0_25], %33 {strides = array<i32>} : memref<8x1xf32, #tpu.memory_space<vmem>>, vector<8x1xf32>,
    } else {
    }
    %c0 = arith.constant 0 : index
    %c0_1 = arith.constant 0 : index
    %3 = vector.load %arg2[%c0, %c0_1] : memref<8x32xbf16, #tpu.memory_space<vmem>>, vector<8x32xbf16>
    %c0_2 = arith.constant 0 : index
    %c0_3 = arith.constant 0 : index
    %4 = vector.load %arg3[%c0_2, %c0_3] : memref<8x32xbf16, #tpu.memory_space<vmem>>, vector<8x32xbf16>
    %cst = arith.constant dense<0.000000e+00> : vector<8x8xf32>
    %5 = tpu.matmul %3, %4, %cst {dimension_numbers = #tpu.dot_dimension_numbers<[1], [1], [0], [0], [0, 0, 1, 0], [], []>} : vector<8x32xbf16>, vector<8x32xbf16>, vector<8x8xf32> -> vector<8x8xf32>
    %c0_4 = arith.constant 0 : index
    %c0_5 = arith.constant 0 : index
    %6 = vector.load %arg4[%c0_4, %c0_5] : memref<8x1xf32, #tpu.memory_space<vmem>>, vector<8x1xf32>
    %7 = vector.broadcast %6 : vector<8x1xf32> to vector<8x8xf32>
    %8 = arith.mulf %5, %7 : vector<8x8xf32>
    %c0_6 = arith.constant 0 : index
    %c0_7 = arith.constant 0 : index
    %9 = vector.load %arg5[%c0_6, %c0_7] : memref<1x8xf32, #tpu.memory_space<vmem>>, vector<1x8xf32>
    %10 = vector.broadcast %9 : vector<1x8xf32> to vector<8x8xf32>
    %11 = arith.mulf %8, %10 : vector<8x8xf32>
    %c0_8 = arith.constant 0 : index
    %c0_9 = arith.constant 0 : index
    %12 = vector.load %arg8[%c0_8, %c0_9] : memref<8x1xf32, #tpu.memory_space<vmem>>, vector<8x1xf32>
    %cst_10 = arith.constant dense<0xFF800000> : vector<8xf32>
    %13 = vector.multi_reduction <maximumf>, %11, %cst_10 [1] : vector<8x8xf32> to vector<8xf32>
    %14 = vector.shape_cast %13 : vector<8xf32> to vector<8x1xf32>
    %15 = arith.maximumf %12, %14 : vector<8x1xf32>
    %16 = vector.broadcast %15 : vector<8x1xf32> to vector<8x8xf32>
    %17 = arith.subf %11, %16 : vector<8x8xf32>
    %18 = math.exp %17 : vector<8x8xf32>
    %19 = arith.subf %12, %15 : vector<8x1xf32>
    %20 = math.exp %19 : vector<8x1xf32>
    %c0_11 = arith.constant 0 : index
    %c0_12 = arith.constant 0 : index
    %21 = vector.load %arg9[%c0_11, %c0_12] : memref<8x1xf32, #tpu.memory_space<vmem>>, vector<8x1xf32>
    %22 = arith.mulf %20, %21 : vector<8x1xf32>
    %cst_13 = arith.constant dense<0.000000e+00> : vector<8xf32>
    %23 = vector.multi_reduction <add>, %18, %cst_13 [1] : vector<8x8xf32> to vector<8xf32>
    %24 = vector.shape_cast %23 : vector<8xf32> to vector<8x1xf32>
    %25 = arith.addf %22, %24 : vector<8x1xf32>
    %c0_14 = arith.constant 0 : index
    %c0_15 = arith.constant 0 : index
    %26 = vector.load %arg9[%c0_14, %c0_15] : memref<8x1xf32, #tpu.memory_space<vmem>>, vector<8x1xf32>
    tpu.vector_store %arg9[%c0_14, %c0_15], %25 {strides = array<i32>} : memref<8x1xf32, #tpu.memory_space<vmem>>, vector<8x1xf32>,
    %c0_16 = arith.constant 0 : index
    %c0_17 = arith.constant 0 : index
    %27 = vector.load %arg8[%c0_16, %c0_17] : memref<8x1xf32, #tpu.memory_space<vmem>>, vector<8x1xf32>
    tpu.vector_store %arg8[%c0_16, %c0_17], %15 {strides = array<i32>} : memref<8x1xf32, #tpu.memory_space<vmem>>, vector<8x1xf32>,
    %c0_i32_18 = arith.constant 0 : i32
    %28 = arith.cmpi eq, %arg1, %c0_i32_18 : i32
    %29 = arith.extui %28 : i1 to i32
    %c0_i32_19 = arith.constant 0 : i32
    %30 = arith.cmpi ne, %29, %c0_i32_19 : i32
    scf.if %30 {
      %c0_20 = arith.constant 0 : index
      %c0_21 = arith.constant 0 : index
      %31 = vector.load %arg8[%c0_20, %c0_21] : memref<8x1xf32, #tpu.memory_space<vmem>>, vector<8x1xf32>
      %c0_22 = arith.constant 0 : index
      %c0_23 = arith.constant 0 : index
      %32 = vector.load %arg9[%c0_22, %c0_23] : memref<8x1xf32, #tpu.memory_space<vmem>>, vector<8x1xf32>
      %33 = math.log %32 : vector<8x1xf32>
      %34 = arith.addf %31, %33 : vector<8x1xf32>
      %c0_24 = arith.constant 0 : index
      %c0_25 = arith.constant 0 : index
      %35 = vector.load %arg6[%c0_24, %c0_25] : memref<8x1xf32, #tpu.memory_space<vmem>>, vector<8x1xf32>
      %36 = arith.subf %34, %35 : vector<8x1xf32>
      %c0_26 = arith.constant 0 : index
      %c0_27 = arith.constant 0 : index
      %37 = vector.load %arg7[%c0_26, %c0_27] : memref<8x1xf32, #tpu.memory_space<vmem>>, vector<8x1xf32>
      tpu.vector_store %arg7[%c0_26, %c0_27], %36 {strides = array<i32>} : memref<8x1xf32, #tpu.memory_space<vmem>>, vector<8x1xf32>,
    } else {
    }
    return
  }
  func.func @transform_0(%arg0: i32, %arg1: i32) -> (i32, i32) {
    %c0_i32 = arith.constant 0 : i32
    %c0_i32_0 = arith.constant 0 : i32
    return %arg0, %c0_i32 : i32, i32
  }
  func.func @transform_1(%arg0: i32, %arg1: i32) -> (i32, i32) {
    %c0_i32 = arith.constant 0 : i32
    %c0_i32_0 = arith.constant 0 : i32
    return %arg1, %c0_i32 : i32, i32
  }
  func.func @transform_2(%arg0: i32, %arg1: i32) -> (i32, i32) {
    %c0_i32 = arith.constant 0 : i32
    %c0_i32_0 = arith.constant 0 : i32
    return %arg0, %c0_i32 : i32, i32
  }
  func.func @transform_3(%arg0: i32, %arg1: i32) -> (i32, i32) {
    %c0_i32 = arith.constant 0 : i32
    %c0_i32_0 = arith.constant 0 : i32
    return %c0_i32, %arg1 : i32, i32
  }
  func.func @transform_4(%arg0: i32, %arg1: i32) -> (i32, i32) {
    %c0_i32 = arith.constant 0 : i32
    %c0_i32_0 = arith.constant 0 : i32
    return %arg0, %c0_i32 : i32, i32
  }
  func.func @transform_5(%arg0: i32, %arg1: i32) -> (i32, i32) {
    %c0_i32 = arith.constant 0 : i32
    %c0_i32_0 = arith.constant 0 : i32
    return %arg0, %c0_i32 : i32, i32
  }
}

</mosaic_0001>

<llo_original>
// kernel: tpu_custom_call.1
$region0: #{tpu_custom_call.1}
  #allocation0 [shape = 'u32[]', space=smem, size = 0x4, offset = 0x4, fixed_abs, tag = 'smem constant byte address 0x4 - core index']
  #allocation1 [shape = 'u32[144,128]{1,0:T(1,128)}', space=vmem, size = 0x12000, scoped, tag = 'internal scratch']
  #allocation2 [shape = 'f32[8,1]{1,0:T(8,128)}', space=vmem, size = 0x1000, scoped, tag = 'scratch operand']
  #allocation3 [shape = 'f32[8,1]{1,0:T(8,128)}', space=vmem, size = 0x1000, scoped, tag = 'scratch operand']
  %s0 = inlined_call_operand.vmem [shape: bf16[8,32], index: 0, kind: input, shape index: {}]
  %s1 = inlined_call_operand.vmem [shape: bf16[8,32], index: 1, kind: input, shape index: {}]
  %s2 = inlined_call_operand.vmem [shape: f32[8,1], index: 2, kind: input, shape index: {}]
  %s3 = inlined_call_operand.vmem [shape: f32[1,8], index: 3, kind: input, shape index: {}]
  %s4 = inlined_call_operand.vmem [shape: f32[8,1], index: 4, kind: input, shape index: {}]
  %s5 = inlined_call_operand.vmem [shape: f32[8,1], index: 5, kind: output, shape index: {}]
  %s6 = sld [smem:[#allocation0]]
  $region38: #{tpu_custom_call.1} parent=0
    _
  %s8 = ssub.s32 1, %s6
  %s9 = scalar_select 0, %s8, %s6
  // Predicated region
  $region2: #{tpu_custom_call.1} parent=0 // pred_check
    _
  $region3: #{tpu_custom_call.1} parent=0 // pred_check_branch
    %11 = sbr.rel (0) target = $region5
  $region4: #{tpu_custom_call.1} parent=0 // pred_region
    _
  $region5: #{tpu_custom_call.1} parent=0 // pred_fallthru
    _
  // Predicated region
  $region6: #{tpu_custom_call.1} parent=0 // pred_check
    _
  $region7: #{tpu_custom_call.1} parent=0 // pred_check_branch
    %13 = sbr.rel (0) target = $region9
  $region8: #{tpu_custom_call.1} parent=0 // pred_region
    _
  $region9: #{tpu_custom_call.1} parent=0 // pred_fallthru
    _
  // Predicated region
  $region10: #{tpu_custom_call.1} parent=0 // pred_check
    _
  $region11: #{tpu_custom_call.1} parent=0 // pred_check_branch
    %15 = sbr.rel (0) target = $region13
  $region12: #{tpu_custom_call.1} parent=0 // pred_region
    _
  $region13: #{tpu_custom_call.1} parent=0 // pred_fallthru
    _
  // Predicated region
  $region14: #{tpu_custom_call.1} parent=0 // pred_check
    _
  $region15: #{tpu_custom_call.1} parent=0 // pred_check_branch
    %17 = sbr.rel (0) target = $region17
  $region16: #{tpu_custom_call.1} parent=0 // pred_region
    _
  $region17: #{tpu_custom_call.1} parent=0 // pred_fallthru
    _
  // Predicated region
  $region18: #{tpu_custom_call.1} parent=0 // pred_check
    _
  $region19: #{tpu_custom_call.1} parent=0 // pred_check_branch
    %19 = sbr.rel (0) target = $region21
  $region20: #{tpu_custom_call.1} parent=0 // pred_region
    _
  $region21: #{tpu_custom_call.1} parent=0 // pred_fallthru
    _
  %p21 = scmp.eq.s32.totalorder 0, 0
  // Predicated region
  $region22: #{tpu_custom_call.1} parent=0 // pred_check
    %p22 = pneg %p21
  $region23: #{tpu_custom_call.1} parent=0 // pred_check_branch
    %24 = sbr.rel (%p22) target = $region25
  $region24: #{tpu_custom_call.1} parent=0 // pred_region
    %vm25 = vcmask 7168
    %26 = vst.msk [vmem:[#allocation2] sm:$0xff] %vm25, -inf
    %27 = vst.msk [vmem:[#allocation3] sm:$0xff] %vm25, 0.0
  $region25: #{tpu_custom_call.1} parent=0 // pred_fallthru
    _
  %v28 = vld [vmem:[%s0] sm:$0xf]
  %v29 = vld [vmem:[%s1] sm:$0xf]
  %vm30 = vcmask 261120
  %v32 = vsel %vm30, %v28, 0
  %v35 = vsel %vm30, %v29, 0
  %37 = vmatprep.subr.bf16.mxu0 0
  %38 = vmatpush1.bf16.xpose.msra.mxu0 %v35
  %39 = vmatprep.subr.bf16.mxu0 0
  %40 = vmatpush1.bf16.xpose.msra.mxu0 0
  %41 = vmatprep.subr.bf16.mxu0 0
  %42 = vmatpush1.bf16.xpose.msra.mxu0 0
  %43 = vmatprep.subr.bf16.mxu0 0
  %44 = vmatpush1.bf16.xpose.msra.mxu0 0
  %45 = vmatprep.subr.bf16.mxu0 0
  %46 = vmatpush1.bf16.xpose.msra.mxu0 0
  %47 = vmatprep.subr.bf16.mxu0 0
  %48 = vmatpush1.bf16.xpose.msra.mxu0 0
  %49 = vmatprep.subr.bf16.mxu0 0
  %50 = vmatpush1.bf16.xpose.msra.mxu0 0
  %51 = vmatprep.subr.bf16.mxu0 0
  %52 = vmatpush1.bf16.xpose.msra.mxu0 0
  %53 = vmatprep.subr.bf16.mxu0 0
  %54 = vmatpush1.bf16.xpose.msra.mxu0 0
  %55 = vmatprep.subr.bf16.mxu0 0
  %56 = vmatpush1.bf16.xpose.msra.mxu0 0
  %57 = vmatprep.subr.bf16.mxu0 0
  %58 = vmatpush1.bf16.xpose.msra.mxu0 0
  %59 = vmatprep.subr.bf16.mxu0 0
  %60 = vmatpush1.bf16.xpose.msra.mxu0 0
  %61 = vmatprep.subr.bf16.mxu0 0
  %62 = vmatpush1.bf16.xpose.msra.mxu0 0
  %63 = vmatprep.subr.bf16.mxu0 0
  %64 = vmatpush1.bf16.xpose.msra.mxu0 0
  %65 = vmatprep.subr.bf16.mxu0 0
  %66 = vmatpush1.bf16.xpose.msra.mxu0 0
  %67 = vmatprep.subr.bf16.mxu0 0
  %68 = vmatpush1.bf16.xpose.msra.mxu0 0
  %69 = vmatprep.mubr.bf16.mxu0 0
  %70 = vmatmul.mubr.bf16.gmra.mrb[0].mxu0 %v32
  %v71 = vpop.f32.mrb[0].mxu0
  %v72 = vadd.f32 0.0, %v71
  %v73 = vpop.f32.mrb[0].mxu0
  %v74 = vpop.f32.mrb[0].mxu0
  %v75 = vpop.f32.mrb[0].mxu0
  %76 = vdwg.mxu0
  %v77 = vld [vmem:[%s2] sm:$0xff]
  %79 = vset.pattern.permute.xlu0 0
  %80 = vperm.xlu0 %79, %v77
  %v81 = vpop.permute.xlu0 %80
  %v83 = vmul.f32 %v72, %v81
  %v84 = vld [vmem:[%s3] sm:$0x1]
  %v86 = vlaneseq
  %v87 = vshrl.u32 %v86, 7
  %v88 = vsub.s32 0, %v87
  %v89 = vrot.slane %v84, %v88
  %v91 = vmul.f32 %v83, %v89
  %v92 = vld [vmem:[#allocation2] sm:$0xff]
  %vm93 = vcmask 64512
  %v94 = vsel %vm93, %v91, -inf
  %95 = vmax.xlane.f32.xlu0 %v94
  %v96 = vpop.xlane.xlu0 %95
  %v97 = vmax.f32 %v92, %v96
  %99 = vset.pattern.permute.xlu0 0
  %100 = vperm.xlu0 %99, %v97
  %v101 = vpop.permute.xlu0 %100
  %v103 = vsub.f32 %v91, %v101
  %v104 = vmul.f32 %v103, 1.442695
  %v105 = vpow.pop %v104
  %v106 = vsub.f32 %v92, %v97
  %v107 = vmul.f32 %v106, 1.442695
  %v108 = vpow.pop %v107
  %v109 = vld [vmem:[#allocation3] sm:$0xff]
  %v110 = vmul.f32 %v108, %v109
  %v111 = vsel %vm93, %v105, 0.0
  %112 = vadd.xlane.f32.xlu0 %v111
  %v113 = vpop.xlane.xlu0 %112
  %v114 = vadd.f32 %v110, %v113
  %vm115 = vcmask 7168
  %116 = vst.msk [vmem:[#allocation3] sm:$0xff] %vm115, %v114
  %117 = vst.msk [vmem:[#allocation2] sm:$0xff] %vm115, %v97
  // Predicated region
  $region26: #{tpu_custom_call.1} parent=0 // pred_check
    %p118 = pneg %p21
  $region27: #{tpu_custom_call.1} parent=0 // pred_check_branch
    %120 = sbr.rel (%p118) target = $region29
  $region28: #{tpu_custom_call.1} parent=0 // pred_region
    %v121 = vld [vmem:[#allocation2] sm:$0xff]
    %v122 = vld [vmem:[#allocation3] sm:$0xff]
    %v123 = vlog2.pop %v122
    %v124 = vmul.f32 %v123, 0.6931472
    %v125 = vadd.f32 %v121, %v124
    %v126 = vld [vmem:[%s4] sm:$0xff]
    %v127 = vsub.f32 %v125, %v126
    %128 = vst.msk [vmem:[%s5] sm:$0xff] %vm115, %v127
  $region29: #{tpu_custom_call.1} parent=0 // pred_fallthru
    _
  // Predicated region
  $region30: #{tpu_custom_call.1} parent=0 // pred_check
    _
  $region31: #{tpu_custom_call.1} parent=0 // pred_check_branch
    %130 = sbr.rel (0) target = $region33
  $region32: #{tpu_custom_call.1} parent=0 // pred_region
    _
  $region33: #{tpu_custom_call.1} parent=0 // pred_fallthru
    _
  // Predicated region
  $region34: #{tpu_custom_call.1} parent=0 // pred_check
    _
  $region35: #{tpu_custom_call.1} parent=0 // pred_check_branch
    %132 = sbr.rel (0) target = $region37
  $region36: #{tpu_custom_call.1} parent=0 // pred_region
    _
  $region37: #{tpu_custom_call.1} parent=0 // pred_fallthru
    _

</llo_original>
